<compile_context>
chip_gen: v5e
topology: v5e:2x2
jax: 0.10.0
libtpu: 0.0.40
codegen_flags: <defaults>
</compile_context>

<pallas_src>
import functools

import jax
import jax.numpy as jnp
from jax.experimental import pallas as pl
from jax.experimental.pallas import tpu as pltpu


def _round_up(x, m):
    return ((x + m - 1) // m) * m


def _cdiv(a, b):
    return (a + b - 1) // b


# --------------------------------------------------------------------------
# Pallas kernel: W(Cout,Cin) @ X(Cin, tile_s)  == 1x1x1 conv (no bias),
# spatial flattened onto the lane dimension.
# --------------------------------------------------------------------------
def _conv1x1_kernel(x_ref, w_ref, o_ref):
    # x_ref: (Cin, tile_s), w_ref: (Cout, Cin), o_ref: (Cout, tile_s)
    o_ref[...] = jnp.dot(
        w_ref[...], x_ref[...], preferred_element_type=jnp.float32
    ).astype(o_ref.dtype)


def _choose_tile(S, B, max_tile_s):
    """Pick a lane-aligned spatial tile.

    Goals: as large as possible (up to max_tile_s) to amortize the ~0.35us
    per-grid-step overhead; multiple of 128 lanes (or the full extent for tiny
    inputs); keep >= 2 total grid steps so both v7x TensorCores get work.
    The ragged tail is handled by Pallas edge-block clipping, not padding.
    """
    max_tile_s = max(128, _round_up(max_tile_s, 128))
    S128 = _round_up(S, 128)
    n_tiles = max(1, _cdiv(S128, max_tile_s))
    if B * n_tiles < 2 and S128 >= 256:
        n_tiles = 2  # keep both v7x TensorCores busy
    tile_s = min(128 * _cdiv(S, 128 * n_tiles), max_tile_s)
    if tile_s >= S:
        return S, 1  # full-extent block (allowed even if S % 128 != 0)
    return tile_s, _cdiv(S, tile_s)


def conv1x1_pallas(x3, w_mat, max_tile_s=32768, out_dtype=None):
    """Channel-mixing 1x1x1 conv.

    x3:    (B, Cin, S)  -- NCDHW with spatial flattened onto the lane axis
    w_mat: (Cout, Cin)
    ->     (B, Cout, S)
    """
    B, Cin, S = x3.shape
    Cout = w_mat.shape[0]
    out_dtype = x3.dtype if out_dtype is None else out_dtype

    tile_s, n_tiles = _choose_tile(S, B, max_tile_s)
    grid = (B, n_tiles)

    # Double-buffered VMEM footprint (in + out blocks) + resident weight.
    in_elt = jnp.dtype(x3.dtype).itemsize
    out_elt = jnp.dtype(out_dtype).itemsize
    need = 2 * tile_s * (Cin * in_elt + Cout * out_elt) + 2 * Cout * Cin * in_elt
    vmem_limit = int(min(64 * 2**20, max(32 * 2**20, 1.5 * need)))

    return pl.pallas_call(
        _conv1x1_kernel,
        out_shape=jax.ShapeDtypeStruct((B, Cout, S), out_dtype),
        grid_spec=pltpu.PrefetchScalarGridSpec(
            num_scalar_prefetch=0,
            grid=grid,
            in_specs=[
                # Batch dim squeezed (None) -> kernel sees (Cin, tile_s).
                # Last (ragged) tile is clipped by Pallas; no jnp.pad copy.
                pl.BlockSpec((None, Cin, tile_s), lambda b, j: (b, 0, j)),
                # Constant index_map -> weight stays resident in VMEM.
                pl.BlockSpec((Cout, Cin), lambda b, j: (0, 0)),
            ],
            out_specs=pl.BlockSpec((None, Cout, tile_s), lambda b, j: (b, 0, j)),
        ),
        compiler_params=pltpu.CompilerParams(
            dimension_semantics=("parallel", "parallel"),
            vmem_limit_bytes=vmem_limit,
        ),
    )(x3, w_mat)


# --------------------------------------------------------------------------
# pixel_shuffle_3d (glue, matches the PyTorch reference exactly)
# --------------------------------------------------------------------------
def pixel_shuffle_3d(x, scale_factor):
    if isinstance(scale_factor, int):
        scale_factor = [scale_factor] * 3
    b, c, d, h, w = x.shape
    c_out = c // (scale_factor[0] * scale_factor[1] * scale_factor[2])
    v = x.reshape(b, c_out, scale_factor[0], scale_factor[1], scale_factor[2], d, h, w)
    v = jnp.transpose(v, (0, 1, 5, 2, 6, 3, 7, 4))
    return v.reshape(
        b, c_out, d * scale_factor[0], h * scale_factor[1], w * scale_factor[2]
    )


# --------------------------------------------------------------------------
# Upconv3d forward (k=1, full=False, scale_factor=2)
# --------------------------------------------------------------------------
def upconv3d_forward(x, conv_weight, scale_factor=(2, 2, 2),
                     max_tile_s=32768, out_dtype=None):
    """
    x:           (B, ic, D, H, W)        -- NCDHW, PyTorch convention
    conv_weight: (oc*sf^3, ic, 1, 1, 1)  -- nn.Conv3d weight layout, bias=False
    returns:     (B, oc, D*sf, H*sf, W*sf)
    """
    if isinstance(scale_factor, int):
        scale_factor = (scale_factor,) * 3
    sd, sh, sw = scale_factor
    B, Cin, D, H, W = x.shape
    Cout_total = conv_weight.shape[0]
    oc = Cout_total // (sd * sh * sw)

    # 1x1x1 conv == channel matmul in native NCDHW layout (no pre-transposes).
    w_mat = conv_weight.reshape(Cout_total, Cin)              # (Cout_total, Cin)
    x3 = x.reshape(B, Cin, D * H * W)                         # contiguous reshape
    y3 = conv1x1_pallas(x3, w_mat, max_tile_s=max_tile_s,
                        out_dtype=out_dtype)                  # (B, Cout_total, S)

    # pixel_shuffle_3d fused with the spatial un-flatten: one XLA copy pass.
    v = y3.reshape(B, oc, sd, sh, sw, D, H, W)
    v = jnp.transpose(v, (0, 1, 5, 2, 6, 3, 7, 4))
    return v.reshape(B, oc, D * sd, H * sh, W * sw)


if __name__ == "__main__":
    # Small deterministic example: B=2, ic=4, oc=4, spatial=8^3, scale_factor=2
    B, ic, oc = 2, 4, 4
    D = H = W = 8
    sf = (2, 2, 2)
    sf_prod = sf[0] * sf[1] * sf[2]

    key = jax.random.PRNGKey(0)
    kx, kw = jax.random.split(key)
    x = jax.random.normal(kx, (B, ic, D, H, W), dtype=jnp.float32)
    # nn.Conv3d(ic, oc*sf^3, 1, bias=False) weight shape: (oc*sf^3, ic, 1, 1, 1)
    conv_weight = (
        jax.random.normal(kw, (oc * sf_prod, ic, 1, 1, 1), dtype=jnp.float32) * 0.1
    )

    fwd = jax.jit(functools.partial(upconv3d_forward, scale_factor=sf))
    out = jax.block_until_ready(fwd(x, conv_weight))
    assert out.shape == (B, oc, D * sf[0], H * sf[1], W * sf[2])

    # Silent correctness check against a pure-JAX reference
    w_mat = conv_weight.reshape(oc * sf_prod, ic)
    y_ref = jnp.einsum("ec,bcdhw->bedhw", w_mat, x)
    ref = pixel_shuffle_3d(y_ref, list(sf))
    assert jnp.allclose(out, ref, atol=1e-5, rtol=1e-5)

    print("KERNEL_OK")
</pallas_src>

<mosaic_0001>
module attributes {stable_mosaic.version = 11 : i64} {
  func.func @_conv1x1_kernel(%arg0: i32, %arg1: i32, %arg2: memref<1x4x512xf32, #tpu.memory_space<vmem>>, %arg3: memref<32x4xf32, #tpu.memory_space<vmem>>, %arg4: memref<1x32x512xf32, #tpu.memory_space<vmem>>) attributes {dimension_semantics = [#tpu.dimension_semantics<parallel>, #tpu.dimension_semantics<parallel>], iteration_bounds = array<i64: 2, 1>, scalar_prefetch = 0 : i64, scratch_operands = 0 : i64, tpu.core_type = #tpu.core_type<tc>, window_params = [{transform_indices = @transform_0, window_bounds = array<i64: 1, 4, 512>}, {pipeline_mode = #tpu.pipeline_mode<synchronous>, transform_indices = @transform_1, window_bounds = array<i64: 32, 4>}, {transform_indices = @transform_2, window_bounds = array<i64: 1, 32, 512>}]} {
    %c0 = arith.constant 0 : index
    %c0_0 = arith.constant 0 : index
    %0 = vector.load %arg3[%c0, %c0_0] : memref<32x4xf32, #tpu.memory_space<vmem>>, vector<32x4xf32>
    %c0_1 = arith.constant 0 : index
    %c0_2 = arith.constant 0 : index
    %c0_3 = arith.constant 0 : index
    %1 = vector.load %arg2[%c0_1, %c0_2, %c0_3] : memref<1x4x512xf32, #tpu.memory_space<vmem>>, vector<1x4x512xf32>
    %2 = vector.shape_cast %1 : vector<1x4x512xf32> to vector<4x512xf32>
    %cst = arith.constant dense<0.000000e+00> : vector<32x512xf32>
    %3 = tpu.matmul %0, %2, %cst {dimension_numbers = #tpu.dot_dimension_numbers<[1], [0], [0], [1], [0, 0, 1, 1], [], []>} : vector<32x4xf32>, vector<4x512xf32>, vector<32x512xf32> -> vector<32x512xf32>
    %c0_4 = arith.constant 0 : index
    %c0_5 = arith.constant 0 : index
    %c0_6 = arith.constant 0 : index
    %4 = vector.load %arg4[%c0_4, %c0_5, %c0_6] : memref<1x32x512xf32, #tpu.memory_space<vmem>>, vector<1x32x512xf32>
    %5 = vector.shape_cast %4 : vector<1x32x512xf32> to vector<32x512xf32>
    %6 = vector.shape_cast %3 : vector<32x512xf32> to vector<1x32x512xf32>
    tpu.vector_store %arg4[%c0_4, %c0_5, %c0_6], %6 {strides = array<i32>} : memref<1x32x512xf32, #tpu.memory_space<vmem>>, vector<1x32x512xf32>,
    return
  }
  func.func @transform_0(%arg0: i32, %arg1: i32) -> (i32, i32, i32) {
    %c0_i32 = arith.constant 0 : i32
    %c0_i32_0 = arith.constant 0 : i32
    return %arg0, %c0_i32, %arg1 : i32, i32, i32
  }
  func.func @transform_1(%arg0: i32, %arg1: i32) -> (i32, i32) {
    %c0_i32 = arith.constant 0 : i32
    %c0_i32_0 = arith.constant 0 : i32
    %c0_i32_1 = arith.constant 0 : i32
    return %c0_i32, %c0_i32_0 : i32, i32
  }
  func.func @transform_2(%arg0: i32, %arg1: i32) -> (i32, i32, i32) {
    %c0_i32 = arith.constant 0 : i32
    %c0_i32_0 = arith.constant 0 : i32
    return %arg0, %c0_i32, %arg1 : i32, i32, i32
  }
}

</mosaic_0001>

<llo_original>
// kernel: upconv3d_forward.1
$region0: #{upconv3d_forward.1}
  #allocation0 [shape = 'u32[]', space=smem, size = 0x4, offset = 0x4, fixed_abs, tag = 'smem constant byte address 0x4 - core index']
  #allocation1 [shape = 'u32[72,128]{1,0:T(1,128)}', space=vmem, size = 0x9000, scoped, tag = 'internal scratch']
  %s0 = inlined_call_operand.vmem [shape: f32[2,4,512], index: 0, kind: input, shape index: {}]
  %s1 = inlined_call_operand.vmem [shape: f32[32,4], index: 1, kind: input, shape index: {}]
  %s2 = inlined_call_operand.vmem [shape: f32[2,32,512], index: 2, kind: output, shape index: {}]
  %s3 = sld [smem:[#allocation0]]
  $region41: #{upconv3d_forward.1} parent=0
    _
  %s5 = ssub.s32 1, %s3
  %s6 = scalar_select 0, %s5, %s3
  loop: start=0, step=1, limit=4
  $region2: #{upconv3d_forward.1} parent=0 // loop_pre_header
    _
  $region3: #{upconv3d_forward.1} parent=0 // loop_header
    %s8 = sphi 0, %s12
    %p9 = scmp.ge.s32.totalorder %s8, 4
    %s15 = sphi 0, %s27
    %s16 = sphi 0, %s23
    %s17 = sphi 0, %s15
    %s18 = sphi 0, %s16
    %s19 = sphi 0, %s17
    %s20 = sphi 0, %s18
    %s32 = sphi 0, %s34
    %s35 = sphi 0, %s32
    %s36 = sphi 0, %s35
    %s52 = sphi 0, %s36
    %s56 = sphi 0, %s56
    %s58 = sphi 0, %s56
    %s59 = sphi 0, %s58
    %s73 = sphi 0, %s59
    %s81 = sphi 0, %s83
    %s84 = sphi 0, %s81
    %s85 = sphi 0, %s84
    %s101 = sphi 0, %s85
  $region4: #{upconv3d_forward.1} parent=0 // loop_header_branch
    %11 = sbr.rel (%p9) target = $region8
  $region5: #{upconv3d_forward.1} parent=0 // loop_body
    %s13 = ssub.s32 %s8, 1
    %s14 = ssub.s32 %s8, 2
    %s21 = sadd.s32 1, %s16
    %p22 = scmp.ge.s32.totalorder %s21, 1
    %s23 = scalar_select %p22, 0, %s21
    %s24 = sadd.s32 1, %s15
    %s25 = scalar_select %p22, %s24, %s15
    %p26 = scmp.ge.s32.totalorder %s25, 2
    %s27 = scalar_select %p26, 0, %s25
    %s28 = ssub.s32 %s15, %s27
    %s29 = ssub.s32 %s16, %s23
    %s30 = sor.u32 %s28, %s29
    %p31 = scmp.eq.s32.totalorder %s30, 0
    %s33 = sadd.s32 %s32, 1
    %s34 = scalar_select %p31, %s32, %s33
    %p37 = pneg %p31
    %p38 = scmp.eq.s32.totalorder %s8, 1
    %p39 = por %p37, %p38
    %p40 = scmp.ne.s32.totalorder %s32, %s35
    %p41 = scmp.eq.s32.totalorder %s8, 0
    %p42 = por %p40, %p41
    %p43 = scmp.ne.s32.totalorder %s32, %s35
    %p44 = scmp.eq.s32.totalorder %s13, 1
    %p45 = por %p43, %p44
    %p46 = scmp.ne.s32.totalorder %s35, %s36
    %p47 = scmp.eq.s32.totalorder %s13, 0
    %p48 = por %p46, %p47
    %p49 = scmp.ne.s32.totalorder %s35, %s36
    %p50 = scmp.eq.s32.totalorder %s14, 1
    %p51 = por %p49, %p50
    %p53 = scmp.ne.s32.totalorder %s36, %s52
    %p54 = scmp.eq.s32.totalorder %s14, 0
    %p55 = por %p53, %p54
    %s57 = sadd.s32 %s56, 1
    %p60 = scmp.eq.s32.totalorder %s8, 1
    %p61 = scmp.ne.s32.totalorder %s56, %s58
    %p62 = scmp.eq.s32.totalorder %s8, 0
    %p63 = por %p61, %p62
    %p64 = scmp.ne.s32.totalorder %s56, %s58
    %p65 = scmp.eq.s32.totalorder %s13, 1
    %p66 = por %p64, %p65
    %p67 = scmp.ne.s32.totalorder %s58, %s59
    %p68 = scmp.eq.s32.totalorder %s13, 0
    %p69 = por %p67, %p68
    %p70 = scmp.ne.s32.totalorder %s58, %s59
    %p71 = scmp.eq.s32.totalorder %s14, 1
    %p72 = por %p70, %p71
    %p74 = scmp.ne.s32.totalorder %s59, %s73
    %p75 = scmp.eq.s32.totalorder %s14, 0
    %p76 = por %p74, %p75
    %s77 = ssub.s32 %s15, %s27
    %s78 = ssub.s32 %s16, %s23
    %s79 = sor.u32 %s77, %s78
    %p80 = scmp.eq.s32.totalorder %s79, 0
    %s82 = sadd.s32 %s81, 1
    %s83 = scalar_select %p80, %s81, %s82
    %p86 = pneg %p80
    %p87 = scmp.eq.s32.totalorder %s8, 1
    %p88 = por %p86, %p87
    %p89 = scmp.ne.s32.totalorder %s81, %s84
    %p90 = scmp.eq.s32.totalorder %s8, 0
    %p91 = por %p89, %p90
    %p92 = scmp.ne.s32.totalorder %s81, %s84
    %p93 = scmp.eq.s32.totalorder %s13, 1
    %p94 = por %p92, %p93
    %p95 = scmp.ne.s32.totalorder %s84, %s85
    %p96 = scmp.eq.s32.totalorder %s13, 0
    %p97 = por %p95, %p96
    %p98 = scmp.ne.s32.totalorder %s84, %s85
    %p99 = scmp.eq.s32.totalorder %s14, 1
    %p100 = por %p98, %p99
    %p102 = scmp.ne.s32.totalorder %s85, %s101
    %p103 = scmp.eq.s32.totalorder %s14, 0
    %p104 = por %p102, %p103
    %p105 = scmp.le.s32.totalorder 1, %s8
    %p106 = scmp.lt.s32.totalorder %s8, 3
    %p107 = pnand %p105, %p106
    %p108 = pneg %p107
    // Predicated region
    $region9: #{upconv3d_forward.1} parent=5 // pred_check
      _
    $region10: #{upconv3d_forward.1} parent=5 // pred_check_branch
      %110 = sbr.rel (%p107) target = $region12
    $region11: #{upconv3d_forward.1} parent=5 // pred_region
      %s111 = ssub.s32 %s8, 1
      // Predicated region
      $region13: #{upconv3d_forward.1} parent=11 // pred_check
        %p112 = pneg %p69
      $region14: #{upconv3d_forward.1} parent=11 // pred_check_branch
        %114 = sbr.rel (%p112) target = $region16
      $region15: #{upconv3d_forward.1} parent=11 // pred_region
        _
      $region16: #{upconv3d_forward.1} parent=11 // pred_fallthru
        _
    $region12: #{upconv3d_forward.1} parent=5 // pred_fallthru
      _
    %p115 = scmp.lt.s32.totalorder %s8, 2
    // Predicated region
    $region17: #{upconv3d_forward.1} parent=5 // pred_check
      %p116 = pneg %p115
    $region18: #{upconv3d_forward.1} parent=5 // pred_check_branch
      %118 = sbr.rel (%p116) target = $region20
    $region19: #{upconv3d_forward.1} parent=5 // pred_region
      // Predicated region
      $region21: #{upconv3d_forward.1} parent=19 // pred_check
        %p119 = pneg %p42
      $region22: #{upconv3d_forward.1} parent=19 // pred_check_branch
        %121 = sbr.rel (%p119) target = $region24
      $region23: #{upconv3d_forward.1} parent=19 // pred_region
        %s122 = smul.u32 4, %s16
        %p123 = scmp.lt.s32.totalorder %s15, 1
        %s124 = scalar_select %p123, %s15, 1
        %p125 = scmp.lt.s32.totalorder %s122, 3
        %s126 = scalar_select %p125, %s122, 3
        %s127 = smul.addr %s124, 4
        %s128 = sadd.s32 %s126, %s127
        %s129 = smul.addr %s128, 4
        %s130 = scalar_lea.vmem %s0, %s129
        %s131 = smul.u32 4, %s16
      $region24: #{upconv3d_forward.1} parent=19 // pred_fallthru
        _
    $region20: #{upconv3d_forward.1} parent=5 // pred_fallthru
      _
    %p132 = scmp.le.s32.totalorder 1, %s8
    %p133 = scmp.lt.s32.totalorder %s8, 3
    %p134 = pnand %p132, %p133
    %p135 = pneg %p134
    // Predicated region
    $region25: #{upconv3d_forward.1} parent=5 // pred_check
      _
    $region26: #{upconv3d_forward.1} parent=5 // pred_check_branch
      %137 = sbr.rel (%p134) target = $region28
    $region27: #{upconv3d_forward.1} parent=5 // pred_region
      %s138 = ssub.s32 %s8, 1
      %s139 = smul.u32 4, %s18
      %p140 = scmp.lt.s32.totalorder %s17, 1
      %s141 = scalar_select %p140, %s17, 1
      %p142 = scmp.lt.s32.totalorder %s139, 3
      %s143 = scalar_select %p142, %s139, 3
      %s144 = smul.addr %s141, 4
      %s145 = sadd.s32 %s143, %s144
      %s146 = smul.addr %s145, 4
      %s147 = scalar_lea.vmem %s0, %s146
      %p148 = pneg %p48
      %p149 = pneg %p45
      %p150 = pneg %p69
      %p151 = pneg %p66
      %p152 = pneg %p97
      %p153 = pneg %p94
      %s154 = smul.u32 4, %s18
      %p155 = scmp.lt.s32.totalorder %s17, 1
      %s156 = scalar_select %p155, %s17, 1
      %p157 = scmp.lt.s32.totalorder %s154, 3
      %s158 = scalar_select %p157, %s154, 3
      %s159 = smul.addr %s156, 16
      %s160 = sadd.s32 %s158, %s159
      %s161 = smul.addr %s160, 8
      %s162 = scalar_lea.vmem %s2, %s161
      %s163 = smul.u32 4, %s18
      %p164 = scmp.lt.s32.totalorder %s17, 1
      %s165 = scalar_select %p164, %s17, 1
      %p166 = scmp.lt.s32.totalorder %s163, 3
      %s167 = scalar_select %p166, %s163, 3
      %s168 = smul.addr %s165, 4
      %s169 = sadd.s32 %s167, %s168
      %s170 = smul.addr %s169, 4
      %s171 = scalar_lea.vmem %s0, %s170
      %s172 = smul.u32 4, %s18
      %s173 = smul.u32 4, %s18
      %p174 = scmp.lt.s32.totalorder %s17, 1
      %s175 = scalar_select %p174, %s17, 1
      %p176 = scmp.lt.s32.totalorder %s173, 3
      %s177 = scalar_select %p176, %s173, 3
      %s178 = smul.addr %s175, 16
      %s179 = sadd.s32 %s177, %s178
      %s180 = smul.addr %s179, 8
      %s181 = scalar_lea.vmem %s2, %s180
      %s182 = smul.u32 4, %s18
      %v183 = vld [vmem:[%s1] sm:$0xff]
      %v184 = vld [vmem:[%s1 + $0x8] sm:$0xff]
      %v185 = vld [vmem:[%s1 + $0x10] sm:$0xff]
      %v186 = vld [vmem:[%s1 + $0x18] sm:$0xff]
      %v187 = vld [vmem:[%s171] sm:$0xff]
      %v188 = vld [vmem:[%s171 + $0x8] sm:$0xff]
      %191 = vst [vmem:[#allocation1] ss:$2 sm:$0xff] %v187
      %s192 = scalar_lea.vmem [#allocation1], 16
      %193 = vst [vmem:[%s192] ss:$2 sm:$0xff] %v188
      %v194 = vld.sshfl [vmem:[#allocation1] sm:$0xff pattern:$0x75316420]
      %v195 = vld.sshfl [vmem:[#allocation1 + $0x8] sm:$0xff pattern:$0x75316420]
      %v196 = vld.sshfl [vmem:[#allocation1 + $0x10] sm:$0xff pattern:$0x75316420]
      %v197 = vld.sshfl [vmem:[#allocation1 + $0x18] sm:$0xff pattern:$0x75316420]
      %vm198 = vcmask 31744
      %v200 = vsel %vm198, %v183, 0
      %v203 = vsel %vm198, %v184, 0
      %v206 = vsel %vm198, %v185, 0
      %v209 = vsel %vm198, %v186, 0
      %vm211 = vcmask 1043456
      %v212 = vsel %vm211, %v194, 0
      %v214 = vsel %vm211, %v195, 0
      %v216 = vsel %vm211, %v196, 0
      %v218 = vsel %vm211, %v197, 0
      %220 = vmatpush.msra.mxu0 0.0
      %221 = vmatpush.msra.mxu0 0.0
      %222 = vmatpush.msra.mxu0 0.0
      %223 = vmatpush.msra.mxu0 0.0
      %224 = vmatpush.msra.mxu0 0.0
      %225 = vmatpush.msra.mxu0 0.0
      %226 = vmatpush.msra.mxu0 0.0
      %227 = vmatpush.msra.mxu0 0.0
      %228 = vmatpush.msra.mxu0 0.0
      %229 = vmatpush.msra.mxu0 0.0
      %230 = vmatpush.msra.mxu0 0.0
      %231 = vmatpush.msra.mxu0 0.0
      %232 = vmatpush.msra.mxu0 0.0
      %233 = vmatpush.msra.mxu0 0.0
      %234 = vmatpush.msra.mxu0 0.0
      %235 = vmatpush.msra.mxu0 %v212
      %236 = vmatmul.f32.gmra.mxu0 %v200
      %v237 = vpop.f32.mrf.mxu0
      %v238 = vadd.f32 0.0, %v237
      %239 = vmatmul.f32.gmra.mxu0 %v203
      %v240 = vpop.f32.mrf.mxu0
      %v241 = vadd.f32 0.0, %v240
      %242 = vmatmul.f32.gmra.mxu0 %v206
      %v243 = vpop.f32.mrf.mxu0
      %v244 = vadd.f32 0.0, %v243
      %245 = vmatmul.f32.gmra.mxu0 %v209
      %v246 = vpop.f32.mrf.mxu0
      %v247 = vadd.f32 0.0, %v246
      %248 = vdwg.mxu0
      %249 = vmatpush.msra.mxu0 0.0
      %250 = vmatpush.msra.mxu0 0.0
      %251 = vmatpush.msra.mxu0 0.0
      %252 = vmatpush.msra.mxu0 0.0
      %253 = vmatpush.msra.mxu0 0.0
      %254 = vmatpush.msra.mxu0 0.0
      %255 = vmatpush.msra.mxu0 0.0
      %256 = vmatpush.msra.mxu0 0.0
      %257 = vmatpush.msra.mxu0 0.0
      %258 = vmatpush.msra.mxu0 0.0
      %259 = vmatpush.msra.mxu0 0.0
      %260 = vmatpush.msra.mxu0 0.0
      %261 = vmatpush.msra.mxu0 0.0
      %262 = vmatpush.msra.mxu0 0.0
      %263 = vmatpush.msra.mxu0 0.0
      %264 = vmatpush.msra.mxu0 %v214
      %265 = vmatmul.f32.gmra.mxu0 %v200
      %v266 = vpop.f32.mrf.mxu0
      %v267 = vadd.f32 0.0, %v266
      %268 = vmatmul.f32.gmra.mxu0 %v203
      %v269 = vpop.f32.mrf.mxu0
      %v270 = vadd.f32 0.0, %v269
      %271 = vmatmul.f32.gmra.mxu0 %v206
      %v272 = vpop.f32.mrf.mxu0
      %v273 = vadd.f32 0.0, %v272
      %274 = vmatmul.f32.gmra.mxu0 %v209
      %v275 = vpop.f32.mrf.mxu0
      %v276 = vadd.f32 0.0, %v275
      %277 = vdwg.mxu0
      %278 = vmatpush.msra.mxu0 0.0
      %279 = vmatpush.msra.mxu0 0.0
      %280 = vmatpush.msra.mxu0 0.0
      %281 = vmatpush.msra.mxu0 0.0
      %282 = vmatpush.msra.mxu0 0.0
      %283 = vmatpush.msra.mxu0 0.0
      %284 = vmatpush.msra.mxu0 0.0
      %285 = vmatpush.msra.mxu0 0.0
      %286 = vmatpush.msra.mxu0 0.0
      %287 = vmatpush.msra.mxu0 0.0
      %288 = vmatpush.msra.mxu0 0.0
      %289 = vmatpush.msra.mxu0 0.0
      %290 = vmatpush.msra.mxu0 0.0
      %291 = vmatpush.msra.mxu0 0.0
      %292 = vmatpush.msra.mxu0 0.0
      %293 = vmatpush.msra.mxu0 %v216
      %294 = vmatmul.f32.gmra.mxu0 %v200
      %v295 = vpop.f32.mrf.mxu0
      %v296 = vadd.f32 0.0, %v295
      %297 = vmatmul.f32.gmra.mxu0 %v203
      %v298 = vpop.f32.mrf.mxu0
      %v299 = vadd.f32 0.0, %v298
      %300 = vmatmul.f32.gmra.mxu0 %v206
      %v301 = vpop.f32.mrf.mxu0
      %v302 = vadd.f32 0.0, %v301
      %303 = vmatmul.f32.gmra.mxu0 %v209
      %v304 = vpop.f32.mrf.mxu0
      %v305 = vadd.f32 0.0, %v304
      %306 = vdwg.mxu0
      %307 = vmatpush.msra.mxu0 0.0
      %308 = vmatpush.msra.mxu0 0.0
      %309 = vmatpush.msra.mxu0 0.0
      %310 = vmatpush.msra.mxu0 0.0
      %311 = vmatpush.msra.mxu0 0.0
      %312 = vmatpush.msra.mxu0 0.0
      %313 = vmatpush.msra.mxu0 0.0
      %314 = vmatpush.msra.mxu0 0.0
      %315 = vmatpush.msra.mxu0 0.0
      %316 = vmatpush.msra.mxu0 0.0
      %317 = vmatpush.msra.mxu0 0.0
      %318 = vmatpush.msra.mxu0 0.0
      %319 = vmatpush.msra.mxu0 0.0
      %320 = vmatpush.msra.mxu0 0.0
      %321 = vmatpush.msra.mxu0 0.0
      %322 = vmatpush.msra.mxu0 %v218
      %323 = vmatmul.f32.gmra.mxu0 %v200
      %v324 = vpop.f32.mrf.mxu0
      %v325 = vadd.f32 0.0, %v324
      %326 = vmatmul.f32.gmra.mxu0 %v203
      %v327 = vpop.f32.mrf.mxu0
      %v328 = vadd.f32 0.0, %v327
      %329 = vmatmul.f32.gmra.mxu0 %v206
      %v330 = vpop.f32.mrf.mxu0
      %v331 = vadd.f32 0.0, %v330
      %332 = vmatmul.f32.gmra.mxu0 %v209
      %v333 = vpop.f32.mrf.mxu0
      %v334 = vadd.f32 0.0, %v333
      %335 = vdwg.mxu0
      %336 = vst [vmem:[%s181] sm:$0xff] %v238
      %337 = vst [vmem:[%s181 + $0x8] sm:$0xff] %v267
      %338 = vst [vmem:[%s181 + $0x10] sm:$0xff] %v296
      %339 = vst [vmem:[%s181 + $0x18] sm:$0xff] %v325
      %340 = vst [vmem:[%s181 + $0x20] sm:$0xff] %v241
      %341 = vst [vmem:[%s181 + $0x28] sm:$0xff] %v270
      %342 = vst [vmem:[%s181 + $0x30] sm:$0xff] %v299
      %343 = vst [vmem:[%s181 + $0x38] sm:$0xff] %v328
      %344 = vst [vmem:[%s181 + $0x40] sm:$0xff] %v244
      %345 = vst [vmem:[%s181 + $0x48] sm:$0xff] %v273
      %346 = vst [vmem:[%s181 + $0x50] sm:$0xff] %v302
      %347 = vst [vmem:[%s181 + $0x58] sm:$0xff] %v331
      %348 = vst [vmem:[%s181 + $0x60] sm:$0xff] %v247
      %349 = vst [vmem:[%s181 + $0x68] sm:$0xff] %v276
      %350 = vst [vmem:[%s181 + $0x70] sm:$0xff] %v305
      %351 = vst [vmem:[%s181 + $0x78] sm:$0xff] %v334
      %s352 = smul.u32 4, %s18
      %p353 = scmp.lt.s32.totalorder %s17, 1
      %s354 = scalar_select %p353, %s17, 1
      %p355 = scmp.lt.s32.totalorder %s352, 3
      %s356 = scalar_select %p355, %s352, 3
      %s357 = smul.addr %s354, 16
      %s358 = sadd.s32 %s356, %s357
      %s359 = smul.addr %s358, 8
      %s360 = scalar_lea.vmem %s2, %s359
      // Predicated region
      $region29: #{upconv3d_forward.1} parent=27 // pred_check
        %p361 = pneg %p94
      $region30: #{upconv3d_forward.1} parent=27 // pred_check_branch
        %363 = sbr.rel (%p361) target = $region32
      $region31: #{upconv3d_forward.1} parent=27 // pred_region
        %s364 = smul.u32 4, %s18
      $region32: #{upconv3d_forward.1} parent=27 // pred_fallthru
        _
    $region28: #{upconv3d_forward.1} parent=5 // pred_fallthru
      _
    %p365 = scmp.le.s32.totalorder 2, %s8
    // Predicated region
    $region33: #{upconv3d_forward.1} parent=5 // pred_check
      %p366 = pneg %p365
    $region34: #{upconv3d_forward.1} parent=5 // pred_check_branch
      %368 = sbr.rel (%p366) target = $region36
    $region35: #{upconv3d_forward.1} parent=5 // pred_region
      %s369 = ssub.s32 %s8, 2
      // Predicated region
      $region37: #{upconv3d_forward.1} parent=35 // pred_check
        %p370 = pneg %p100
      $region38: #{upconv3d_forward.1} parent=35 // pred_check_branch
        %372 = sbr.rel (%p370) target = $region40
      $region39: #{upconv3d_forward.1} parent=35 // pred_region
        %s373 = smul.u32 4, %s20
        %p374 = scmp.lt.s32.totalorder %s19, 1
        %s375 = scalar_select %p374, %s19, 1
        %p376 = scmp.lt.s32.totalorder %s373, 3
        %s377 = scalar_select %p376, %s373, 3
        %s378 = smul.addr %s375, 16
        %s379 = sadd.s32 %s377, %s378
        %s380 = smul.addr %s379, 8
        %s381 = scalar_lea.vmem %s2, %s380
      $region40: #{upconv3d_forward.1} parent=35 // pred_fallthru
        _
    $region36: #{upconv3d_forward.1} parent=5 // pred_fallthru
      _
  $region6: #{upconv3d_forward.1} parent=0 // loop_footer
    %s12 = sadd.s32 1, %s8
  $region7: #{upconv3d_forward.1} parent=0 // loop_footer_branch
    %7 = sbr.rel target = $region3
  $region8: #{upconv3d_forward.1} parent=0 // loop_exit
    _

</llo_original>
